<compile_context>
chip_gen: v7x
topology: tpu7x:2x2x1
jax: 0.10.0
libtpu: 0.0.40
codegen_flags: <defaults>
</compile_context>

<pallas_src>
import jax
import jax.numpy as jnp
from jax.experimental import pallas as pl
from jax.experimental.pallas import tpu as pltpu


def _jsd2_partial_kernel(p_ref, q_ref, out_ref):
    # Upcast once in-kernel; HBM->VMEM traffic stays in the input dtype.
    p = p_ref[...].astype(jnp.float32)
    q = q_ref[...].astype(jnp.float32)

    # log-softmax pieces; reuse the exponentials for the probabilities.
    pmax = jnp.max(p, axis=-1, keepdims=True)
    qmax = jnp.max(q, axis=-1, keepdims=True)
    ps = p - pmax
    qs = q - qmax
    ep = jnp.exp(ps)
    eq = jnp.exp(qs)
    sp = jnp.sum(ep, axis=-1, keepdims=True)
    sq = jnp.sum(eq, axis=-1, keepdims=True)
    lp = ps - jnp.log(sp)
    lq = qs - jnp.log(sq)
    inv_sp = 1.0 / sp            # exact per-row reciprocal: negligible cost
    inv_sq = 1.0 / sq
    prob_p = ep * inv_sp
    prob_q = eq * inv_sq

    # 0.25/N scaling is applied in the wrapper.
    term = (lp - lq) * (prob_p - prob_q)

    # VPU-only partial reduction down to an (8, V) slab (free reshape along the
    # sublane-tile axis). Final reduction to a scalar happens outside the kernel.
    rt, v = term.shape
    out_ref[...] = jnp.sum(term.reshape(rt // 8, 8, v), axis=0)


def _choose_row_tile(n_rows, v, in_dtype):
    """Largest row tile (multiple of 8) that fits a VMEM budget on this chip."""
    in_bytes = jnp.dtype(in_dtype).itemsize
    try:
        vmem_cap = int(pltpu.get_tpu_info().vmem_capacity_bytes)
    except Exception:
        vmem_cap = 64 << 20  # conservative fallback: v7x per-TensorCore VMEM
    budget = int(vmem_cap * 0.55)
    # 2 inputs x 2 pipeline buffers (input dtype) + ~6 live f32 temporaries per row.
    per_row = 2 * 2 * v * in_bytes + 6 * v * 4
    rt = max(8, min(budget // per_row, 1024))
    rt = (rt // 8) * 8
    n_pad8 = -(-n_rows // 8) * 8
    return int(min(rt, n_pad8)), vmem_cap


def jsd2_pallas(p, q, *, row_tile=None):
    """p, q: same-shape arrays; softmax over the last dim; returns an f32 scalar."""
    assert p.shape == q.shape, "p and q must have the same shape"
    v = p.shape[-1]
    p2 = p.reshape(-1, v)          # keep original dtype (bf16 halves HBM traffic)
    q2 = q.reshape(-1, v)
    n = p2.shape[0]
    in_bytes = jnp.dtype(p2.dtype).itemsize

    rt, vmem_cap = _choose_row_tile(n, v, p2.dtype)
    if row_tile is not None:
        rt = max(8, (int(row_tile) // 8) * 8)

    # Pad rows so N need not divide the tile. Padding both inputs with identical
    # (zero) rows makes lp == lq there, so the padded contribution is exactly 0.
    n_pad = -(-n // rt) * rt
    if n_pad != n:
        pad = ((0, n_pad - n), (0, 0))
        p2 = jnp.pad(p2, pad)
        q2 = jnp.pad(q2, pad)

    num_blocks = n_pad // rt

    cost = pl.CostEstimate(
        flops=12 * n_pad * v,
        transcendentals=2 * n_pad * v,
        bytes_accessed=2 * n_pad * v * in_bytes + num_blocks * 8 * v * 4,
    )

    partials = pl.pallas_call(
        _jsd2_partial_kernel,
        out_shape=jax.ShapeDtypeStruct((num_blocks * 8, v), jnp.float32),
        grid=(num_blocks,),
        in_specs=[
            pl.BlockSpec((rt, v), lambda i: (i, 0)),
            pl.BlockSpec((rt, v), lambda i: (i, 0)),
        ],
        out_specs=pl.BlockSpec((8, v), lambda i: (i, 0)),
        compiler_params=pltpu.CompilerParams(
            # Independent per-block partials -> grid can shard across both
            # TensorCores on v7x; neutral on single-TC v5e/v6e.
            dimension_semantics=("parallel",),
            vmem_limit_bytes=int(min(vmem_cap * 0.9, 120 << 20)),
        ),
        cost_estimate=cost,
    )(p2, q2)

    # Tiny tree-reduced finalization; 'batchmean' divides by the true row count.
    return 0.25 * jnp.sum(partials) / jnp.float32(n)


def _jsd2_ref(p, q):
    """Pure-JAX reference mirroring the PyTorch module exactly."""
    v = p.shape[-1]
    lp = jax.nn.log_softmax(p.reshape(-1, v).astype(jnp.float32), axis=-1)
    lq = jax.nn.log_softmax(q.reshape(-1, v).astype(jnp.float32), axis=-1)
    m = 0.5 * (lp + lq)
    n = lp.shape[0]
    kl1 = jnp.sum(jnp.exp(lp) * (lp - m)) / n
    kl2 = jnp.sum(jnp.exp(lq) * (lq - m)) / n
    return 0.5 * (kl1 + kl2)


if __name__ == "__main__":
    key = jax.random.PRNGKey(0)
    kp, kq, kp2, kq2 = jax.random.split(key, 4)

    # Small shapes consistent with the module: batch=2, seq=8, vocab=32.
    p = jax.random.normal(kp, (2, 8, 32), dtype=jnp.float32)
    q = jax.random.normal(kq, (2, 8, 32), dtype=jnp.float32)
    out = jax.block_until_ready(jsd2_pallas(p, q))
    ref = _jsd2_ref(p, q)
    assert jnp.allclose(out, ref, rtol=1e-4, atol=1e-6), (out, ref)

    # Non-divisible row count + bf16 inputs: exercises padding and the low-precision path.
    pb = jax.random.normal(kp2, (3, 5, 40), dtype=jnp.bfloat16)
    qb = jax.random.normal(kq2, (3, 5, 40), dtype=jnp.bfloat16)
    out_b = jax.block_until_ready(jsd2_pallas(pb, qb))
    ref_b = _jsd2_ref(pb, qb)
    assert jnp.allclose(out_b, ref_b, rtol=1e-4, atol=1e-6), (out_b, ref_b)

    print("KERNEL_OK")
</pallas_src>

<mosaic_0001>
module attributes {stable_mosaic.version = 11 : i64} {
  func.func @_jsd2_partial_kernel(%arg0: i32, %arg1: memref<16x32xf32, #tpu.memory_space<vmem>>, %arg2: memref<16x32xf32, #tpu.memory_space<vmem>>, %arg3: memref<8x32xf32, #tpu.memory_space<vmem>>) attributes {dimension_semantics = [#tpu.dimension_semantics<parallel>], iteration_bounds = array<i64: 1>, scalar_prefetch = 0 : i64, scratch_operands = 0 : i64, tpu.core_type = #tpu.core_type<tc>, window_params = [{transform_indices = @transform_0, window_bounds = array<i64: 16, 32>}, {transform_indices = @transform_1, window_bounds = array<i64: 16, 32>}, {transform_indices = @transform_2, window_bounds = array<i64: 8, 32>}]} {
    %c0 = arith.constant 0 : index
    %c0_0 = arith.constant 0 : index
    %0 = vector.load %arg1[%c0, %c0_0] : memref<16x32xf32, #tpu.memory_space<vmem>>, vector<16x32xf32>
    %c0_1 = arith.constant 0 : index
    %c0_2 = arith.constant 0 : index
    %1 = vector.load %arg2[%c0_1, %c0_2] : memref<16x32xf32, #tpu.memory_space<vmem>>, vector<16x32xf32>
    %cst = arith.constant dense<0xFF800000> : vector<16xf32>
    %2 = vector.multi_reduction <maximumf>, %0, %cst [1] : vector<16x32xf32> to vector<16xf32>
    %3 = vector.shape_cast %2 : vector<16xf32> to vector<16x1xf32>
    %cst_3 = arith.constant dense<0xFF800000> : vector<16xf32>
    %4 = vector.multi_reduction <maximumf>, %1, %cst_3 [1] : vector<16x32xf32> to vector<16xf32>
    %5 = vector.shape_cast %4 : vector<16xf32> to vector<16x1xf32>
    %6 = vector.broadcast %3 : vector<16x1xf32> to vector<16x32xf32>
    %7 = arith.subf %0, %6 : vector<16x32xf32>
    %8 = vector.broadcast %5 : vector<16x1xf32> to vector<16x32xf32>
    %9 = arith.subf %1, %8 : vector<16x32xf32>
    %10 = math.exp %7 : vector<16x32xf32>
    %11 = math.exp %9 : vector<16x32xf32>
    %cst_4 = arith.constant dense<0.000000e+00> : vector<16xf32>
    %12 = vector.multi_reduction <add>, %10, %cst_4 [1] : vector<16x32xf32> to vector<16xf32>
    %13 = vector.shape_cast %12 : vector<16xf32> to vector<16x1xf32>
    %cst_5 = arith.constant dense<0.000000e+00> : vector<16xf32>
    %14 = vector.multi_reduction <add>, %11, %cst_5 [1] : vector<16x32xf32> to vector<16xf32>
    %15 = vector.shape_cast %14 : vector<16xf32> to vector<16x1xf32>
    %16 = math.log %13 : vector<16x1xf32>
    %17 = vector.broadcast %16 : vector<16x1xf32> to vector<16x32xf32>
    %18 = arith.subf %7, %17 : vector<16x32xf32>
    %19 = math.log %15 : vector<16x1xf32>
    %20 = vector.broadcast %19 : vector<16x1xf32> to vector<16x32xf32>
    %21 = arith.subf %9, %20 : vector<16x32xf32>
    %cst_6 = arith.constant 1.000000e+00 : f32
    %22 = vector.broadcast %cst_6 : f32 to vector<16x1xf32>
    %23 = arith.divf %22, %13 : vector<16x1xf32>
    %cst_7 = arith.constant 1.000000e+00 : f32
    %24 = vector.broadcast %cst_7 : f32 to vector<16x1xf32>
    %25 = arith.divf %24, %15 : vector<16x1xf32>
    %26 = vector.broadcast %23 : vector<16x1xf32> to vector<16x32xf32>
    %27 = arith.mulf %10, %26 : vector<16x32xf32>
    %28 = vector.broadcast %25 : vector<16x1xf32> to vector<16x32xf32>
    %29 = arith.mulf %11, %28 : vector<16x32xf32>
    %30 = arith.subf %18, %21 : vector<16x32xf32>
    %31 = arith.subf %27, %29 : vector<16x32xf32>
    %32 = arith.mulf %30, %31 : vector<16x32xf32>
    %33 = vector.shape_cast %32 : vector<16x32xf32> to vector<2x8x32xf32>
    %cst_8 = arith.constant dense<0.000000e+00> : vector<8x32xf32>
    %34 = vector.multi_reduction <add>, %33, %cst_8 [0] : vector<2x8x32xf32> to vector<8x32xf32>
    %c0_9 = arith.constant 0 : index
    %c0_10 = arith.constant 0 : index
    %35 = vector.load %arg3[%c0_9, %c0_10] : memref<8x32xf32, #tpu.memory_space<vmem>>, vector<8x32xf32>
    tpu.vector_store %arg3[%c0_9, %c0_10], %34 {strides = array<i32>} : memref<8x32xf32, #tpu.memory_space<vmem>>, vector<8x32xf32>,
    return
  }
  func.func @transform_0(%arg0: i32) -> (i32, i32) {
    %c0_i32 = arith.constant 0 : i32
    %c0_i32_0 = arith.constant 0 : i32
    return %arg0, %c0_i32 : i32, i32
  }
  func.func @transform_1(%arg0: i32) -> (i32, i32) {
    %c0_i32 = arith.constant 0 : i32
    %c0_i32_0 = arith.constant 0 : i32
    return %arg0, %c0_i32 : i32, i32
  }
  func.func @transform_2(%arg0: i32) -> (i32, i32) {
    %c0_i32 = arith.constant 0 : i32
    %c0_i32_0 = arith.constant 0 : i32
    return %arg0, %c0_i32 : i32, i32
  }
}

</mosaic_0001>

<llo_original>
// kernel: tpu_custom_call.1
$region0: #{tpu_custom_call.1}
  #allocation0 [shape = 'u32[]', space=smem, size = 0x4, offset = 0x4, fixed_abs, tag = 'smem constant byte address 0x4 - core index']
  #allocation1 [shape = 'u32[144,128]{1,0:T(1,128)}', space=vmem, size = 0x12000, scoped, tag = 'internal scratch']
  %s0 = inlined_call_operand.hbm [shape: f32[16,32], index: 0, kind: input, shape index: {}]
  %s1 = inlined_call_operand.hbm [shape: f32[16,32], index: 1, kind: input, shape index: {}]
  %s2 = inlined_call_operand.hbm [shape: f32[8,32], index: 2, kind: output, shape index: {}]
  %s3 = sld [smem:[#allocation0]]
  $region26: #{tpu_custom_call.1} parent=0
    _
  %s5 = ssub.s32 1, %s3
  %s6 = scalar_select 0, %s5, %s3
  $region1: #{tpu_custom_call.1} parent=0
    #allocation2 [shape = 'u8[8192]{0}', space=vmem, size = 0x2000, scoped, tag = 'input window, operand 0, single buffered']
    #allocation3 [shape = 's32[1]{0}', space=sflag, size = 0x4, scoped, tag = 'scoped memory for tpu_custom_call.1']
    #allocation4 [shape = 's32[1]{0}', space=sflag, size = 0x4, scoped, tag = 'scoped memory for tpu_custom_call.1']
    #allocation5 [shape = 'u8[8192]{0}', space=vmem, size = 0x2000, scoped, tag = 'input window, operand 1, single buffered']
    #allocation6 [shape = 's32[1]{0}', space=sflag, size = 0x4, scoped, tag = 'scoped memory for tpu_custom_call.1']
    #allocation7 [shape = 'u8[4096]{0}', space=vmem, size = 0x1000, scoped, tag = 'output window, operand 0, single buffered']
    %7 = vsyncpa [#allocation3], 0
    %8 = vsyncpa [#allocation6], 0
    %9 = vsyncpa [#allocation4], 0
    // Predicated region
    $region2: #{tpu_custom_call.1} parent=1 // pred_check
      _
    $region3: #{tpu_custom_call.1} parent=1 // pred_check_branch
      %11 = sbr.rel (0) target = $region5
    $region4: #{tpu_custom_call.1} parent=1 // pred_region
      %s13 = ssub.s32 256, 256
      %14 = vsyncadd [#allocation3], %s13
      %s15 = sshll.u32 [#allocation2], 4
      %s16 = int_to_ptr.vmem [resolvable:$true] %s15
      %21 = dma.hbm_to_vmem [thread:$0]  %s0, 256, %s16, [#allocation3], 128, 128, 8
    $region5: #{tpu_custom_call.1} parent=1 // pred_fallthru
      _
    // Predicated region
    $region6: #{tpu_custom_call.1} parent=1 // pred_check
      _
    $region7: #{tpu_custom_call.1} parent=1 // pred_check_branch
      %23 = sbr.rel (0) target = $region9
    $region8: #{tpu_custom_call.1} parent=1 // pred_region
      %s25 = ssub.s32 256, 256
      %26 = vsyncadd [#allocation6], %s25
      %s27 = sshll.u32 [#allocation5], 4
      %s28 = int_to_ptr.vmem [resolvable:$true] %s27
      %33 = dma.hbm_to_vmem [thread:$0]  %s1, 256, %s28, [#allocation6], 128, 128, 8
    $region9: #{tpu_custom_call.1} parent=1 // pred_fallthru
      _
    // Predicated region
    $region10: #{tpu_custom_call.1} parent=1 // pred_check
      _
    $region11: #{tpu_custom_call.1} parent=1 // pred_check_branch
      %35 = sbr.rel (0) target = $region13
    $region12: #{tpu_custom_call.1} parent=1 // pred_region
      %36 = dma.done [#allocation3], 256
    $region13: #{tpu_custom_call.1} parent=1 // pred_fallthru
      _
    // Predicated region
    $region14: #{tpu_custom_call.1} parent=1 // pred_check
      _
    $region15: #{tpu_custom_call.1} parent=1 // pred_check_branch
      %38 = sbr.rel (0) target = $region17
    $region16: #{tpu_custom_call.1} parent=1 // pred_region
      %39 = dma.done [#allocation6], 256
    $region17: #{tpu_custom_call.1} parent=1 // pred_fallthru
      _
    %v40 = vld [vmem:[#allocation2] sm:$0xff]
    %v41 = vld [vmem:[#allocation2 + $0x8] sm:$0xff]
    %v42 = vld [vmem:[#allocation5] sm:$0xff]
    %v43 = vld [vmem:[#allocation5 + $0x8] sm:$0xff]
    %vm44 = vcmask 261120
    %v45 = vsel %vm44, %v40, -inf
    %46 = vmax.xlane.f32.xlu0 %v45
    %v47 = vpop.xlane.xlu0 %46
    %v48 = vsel %vm44, %v41, -inf
    %49 = vmax.xlane.f32.xlu0 %v48
    %v50 = vpop.xlane.xlu0 %49
    %v51 = vsel %vm44, %v42, -inf
    %52 = vmax.xlane.f32.xlu0 %v51
    %v53 = vpop.xlane.xlu0 %52
    %v54 = vsel %vm44, %v43, -inf
    %55 = vmax.xlane.f32.xlu0 %v54
    %v56 = vpop.xlane.xlu0 %55
    %v57 = vsub.f32 %v40, %v47
    %v58 = vsub.f32 %v41, %v50
    %v59 = vsub.f32 %v42, %v53
    %v60 = vsub.f32 %v43, %v56
    %v61 = vmul.f32 %v57, 1.442695
    %v62 = vpow.pop %v61
    %v63 = vmul.f32 %v58, 1.442695
    %v64 = vpow.pop %v63
    %v65 = vmul.f32 %v59, 1.442695
    %v66 = vpow.pop %v65
    %v67 = vmul.f32 %v60, 1.442695
    %v68 = vpow.pop %v67
    %v69 = vsel %vm44, %v62, 0.0
    %70 = vadd.xlane.f32.xlu0 %v69
    %v71 = vpop.xlane.xlu0 %70
    %v72 = vsel %vm44, %v64, 0.0
    %73 = vadd.xlane.f32.xlu0 %v72
    %v74 = vpop.xlane.xlu0 %73
    %v75 = vsel %vm44, %v66, 0.0
    %76 = vadd.xlane.f32.xlu0 %v75
    %v77 = vpop.xlane.xlu0 %76
    %v78 = vsel %vm44, %v68, 0.0
    %79 = vadd.xlane.f32.xlu0 %v78
    %v80 = vpop.xlane.xlu0 %79
    %v81 = vlog2.pop %v71
    %v82 = vmul.f32 %v81, 0.6931472
    %v83 = vlog2.pop %v74
    %v84 = vmul.f32 %v83, 0.6931472
    %v85 = vsub.f32 %v57, %v82
    %v86 = vsub.f32 %v58, %v84
    %v87 = vlog2.pop %v77
    %v88 = vmul.f32 %v87, 0.6931472
    %v89 = vlog2.pop %v80
    %v90 = vmul.f32 %v89, 0.6931472
    %v91 = vsub.f32 %v59, %v88
    %v92 = vsub.f32 %v60, %v90
    %v93 = vrcp.pop %v71
    %v94 = vmul.f32 1.0, %v93
    %v95 = vrcp.pop %v74
    %v96 = vmul.f32 1.0, %v95
    %v97 = vrcp.pop %v77
    %v98 = vmul.f32 1.0, %v97
    %v99 = vrcp.pop %v80
    %v100 = vmul.f32 1.0, %v99
    %v101 = vmul.f32 %v62, %v94
    %v102 = vmul.f32 %v64, %v96
    %v103 = vmul.f32 %v66, %v98
    %v104 = vmul.f32 %v68, %v100
    %v105 = vsub.f32 %v85, %v91
    %v106 = vsub.f32 %v86, %v92
    %v107 = vsub.f32 %v101, %v103
    %v108 = vsub.f32 %v102, %v104
    %v109 = vmul.f32 %v105, %v107
    %v110 = vmul.f32 %v106, %v108
    %v111 = vsel %vm44, %v109, 0.0
    %v112 = vsel %vm44, %v110, 0.0
    %v113 = vadd.f32 %v111, %v112
    %114 = vst.msk [vmem:[#allocation7] sm:$0xff] %vm44, %v113
    // Predicated region
    $region18: #{tpu_custom_call.1} parent=1 // pred_check
      _
    $region19: #{tpu_custom_call.1} parent=1 // pred_check_branch
      %116 = sbr.rel (0) target = $region21
    $region20: #{tpu_custom_call.1} parent=1 // pred_region
      %s118 = ssub.s32 128, 128
      %119 = vsyncadd [#allocation4], %s118
      %s121 = sshll.u32 [#allocation7], 4
      %s122 = int_to_ptr.vmem [resolvable:$true] %s121
      %124 = dma.vmem_to_hbm [thread:$0]  %s122, 128, %s2, [#allocation4]
    $region21: #{tpu_custom_call.1} parent=1 // pred_fallthru
      _
    // Predicated region
    $region22: #{tpu_custom_call.1} parent=1 // pred_check
      _
    $region23: #{tpu_custom_call.1} parent=1 // pred_check_branch
      %126 = sbr.rel (0) target = $region25
    $region24: #{tpu_custom_call.1} parent=1 // pred_region
      %127 = dma.done [#allocation4], 128
    $region25: #{tpu_custom_call.1} parent=1 // pred_fallthru
      _
    %128 = vsyncpa [#allocation3], 1
    %129 = vsyncpa [#allocation6], 1
    %130 = vsyncpa [#allocation4], 1

</llo_original>
